<compile_context>
chip_gen: v7x
topology: tpu7x:2x2x1
jax: 0.10.0
libtpu: 0.0.40
codegen_flags: <defaults>
</compile_context>

<pallas_src>
import functools

import jax
import jax.numpy as jnp
from jax.experimental import pallas as pl
from jax.experimental.pallas import tpu as pltpu


def _kd_loss_block_kernel(x_ref, t_ref, out_ref, *, inv_temp, batch,
                          block_rows, mask_rows):
    """One batch tile of student/teacher logits [TB, C] -> scalar partial KL."""
    pid = pl.program_id(0)

    # Scale by 1/T with a multiply (no per-element divide).
    x = x_ref[...].astype(jnp.float32) * inv_temp   # student logits / T
    t = t_ref[...].astype(jnp.float32) * inv_temp   # teacher logits / T

    # Student: only the softmax normalizer is needed (log_p never materialized).
    x_max = jnp.max(x, axis=1, keepdims=True)
    x_sh = x - x_max
    x_sum = jnp.sum(jnp.exp(x_sh), axis=1, keepdims=True)

    # Teacher: shifted exps + normalizer.
    t_max = jnp.max(t, axis=1, keepdims=True)
    t_sh = t - t_max
    t_exp = jnp.exp(t_sh)
    t_sum = jnp.sum(t_exp, axis=1, keepdims=True)

    # Folded per-row KL:
    #   row_kl = (1/t_sum) * sum_j t_exp_j * (t_sh_j - x_sh_j)
    #            + log(x_sum) - log(t_sum)
    weighted = jnp.sum(t_exp * (t_sh - x_sh), axis=1, keepdims=True)
    inv_tsum = pl.reciprocal(t_sum, approx=False)            # EUP, off the VALU path
    row_kl = inv_tsum * weighted + (jnp.log(x_sum) - jnp.log(t_sum))  # [TB, 1]

    if mask_rows:
        # Mask padded rows of the (partial) last batch block.
        row_ids = pid * block_rows + jax.lax.broadcasted_iota(
            jnp.int32, row_kl.shape, 0)
        row_kl = jnp.where(row_ids < batch, row_kl, 0.0)

    block_kl = jnp.sum(row_kl)

    # Lane/sublane-dense partial-sum tile: value at [0, 0], zeros elsewhere
    # (unmasked full-vreg store; final reduction happens in the wrapper).
    r = jax.lax.broadcasted_iota(jnp.int32, (8, 128), 0)
    c = jax.lax.broadcasted_iota(jnp.int32, (8, 128), 1)
    out_ref[...] = jnp.where((r == 0) & (c == 0), block_kl, 0.0)


def _choose_block_rows(B, C):
    """Pick a batch tile so double-buffered inputs + f32 intermediates fit VMEM.

    Cap the f32 working tile at ~4 MiB (TB*C <= 1M elements); with 2 inputs x
    2 pipeline buffers plus a handful of f32 temporaries this stays well under
    a 48 MiB scoped-VMEM budget on v5e / v6e / v7x.
    """
    max_elems = 1 << 20
    tb = max(8, min(1024, max_elems // max(C, 1)))
    tb = (tb // 8) * 8                      # sublane-aligned tile height
    if tb >= B:
        return B                            # single full-batch block (always legal)
    return tb


def kd_loss(x, t, temp_factor, *, block_rows=None):
    """x, t: [B, C] logits (f32 or bf16). Returns scalar f32 loss (== PyTorch KDLoss)."""
    assert x.shape == t.shape and x.ndim == 2
    B, C = x.shape
    tb = _choose_block_rows(B, C) if block_rows is None else block_rows
    assert tb == B or (tb >= 8 and tb % 8 == 0)
    grid = pl.cdiv(B, tb)

    # NOTE: when C < 128 (tiny class counts) only C of the 128 lanes are used
    # per vreg; for production-sized class counts C >= 128 this is moot.

    kernel = functools.partial(
        _kd_loss_block_kernel,
        inv_temp=1.0 / float(temp_factor),
        batch=B,
        block_rows=tb,
        mask_rows=(B % tb != 0),
    )

    partials = pl.pallas_call(
        kernel,
        out_shape=jax.ShapeDtypeStruct((grid * 8, 128), jnp.float32),
        grid=(grid,),
        in_specs=[
            pl.BlockSpec((tb, C), lambda i: (i, 0)),
            pl.BlockSpec((tb, C), lambda i: (i, 0)),
        ],
        out_specs=pl.BlockSpec((8, 128), lambda i: (i, 0)),
        compiler_params=pltpu.CompilerParams(
            dimension_semantics=("parallel",),
            vmem_limit_bytes=48 * 1024 * 1024,
        ),
    )(x, t)

    # Final reduction + KD scaling with the TRUE batch size B (not the tile height).
    return jnp.sum(partials) * (float(temp_factor) ** 2) / B


def kd_loss_ref(x, t, temp_factor):
    # Pure-JAX reference for verification.
    xf = x.astype(jnp.float32)
    tf = t.astype(jnp.float32)
    log_p = jax.nn.log_softmax(xf / temp_factor, axis=1)
    q = jax.nn.softmax(tf / temp_factor, axis=1)
    log_q = jax.nn.log_softmax(tf / temp_factor, axis=1)
    kl = jnp.sum(q * (log_q - log_p))
    return kl * temp_factor ** 2 / x.shape[0]


if __name__ == "__main__":
    key = jax.random.PRNGKey(0)
    k1, k2, k3, k4 = jax.random.split(key, 4)

    temp_factor = 4.0     # module __init__ hyperparameter

    # Small logits shape implied by the module: [batch, num_classes].
    B, C = 8, 32
    x = jax.random.normal(k1, (B, C), dtype=jnp.float32)   # student logits
    t = jax.random.normal(k2, (B, C), dtype=jnp.float32)   # teacher logits

    loss = kd_loss(x, t, temp_factor)
    jax.block_until_ready(loss)
    ref = kd_loss_ref(x, t, temp_factor)
    assert jnp.allclose(loss, ref, rtol=1e-5, atol=1e-5), (loss, ref)

    # Exercise the tiled/pipelined path + padded-row masking (B % TB != 0).
    B2, C2 = 20, 128
    x2 = jax.random.normal(k3, (B2, C2), dtype=jnp.float32)
    t2 = jax.random.normal(k4, (B2, C2), dtype=jnp.float32)
    loss2 = kd_loss(x2, t2, temp_factor, block_rows=8)
    jax.block_until_ready(loss2)
    ref2 = kd_loss_ref(x2, t2, temp_factor)
    assert jnp.allclose(loss2, ref2, rtol=1e-5, atol=1e-5), (loss2, ref2)

    # bf16 logits path (kernel casts to f32 internally, same as the reference).
    x3 = x2.astype(jnp.bfloat16)
    t3 = t2.astype(jnp.bfloat16)
    loss3 = kd_loss(x3, t3, temp_factor, block_rows=8)
    jax.block_until_ready(loss3)
    ref3 = kd_loss_ref(x3, t3, temp_factor)
    assert jnp.allclose(loss3, ref3, rtol=1e-4, atol=1e-4), (loss3, ref3)

    print("KERNEL_OK")
</pallas_src>

<mosaic_0001>
module attributes {stable_mosaic.version = 11 : i64} {
  func.func @_kd_loss_block_kernel(%arg0: i32, %arg1: memref<8x32xf32, #tpu.memory_space<vmem>>, %arg2: memref<8x32xf32, #tpu.memory_space<vmem>>, %arg3: memref<8x128xf32, #tpu.memory_space<vmem>>) attributes {dimension_semantics = [#tpu.dimension_semantics<parallel>], iteration_bounds = array<i64: 1>, scalar_prefetch = 0 : i64, scratch_operands = 0 : i64, tpu.core_type = #tpu.core_type<tc>, window_params = [{transform_indices = @transform_0, window_bounds = array<i64: 8, 32>}, {transform_indices = @transform_1, window_bounds = array<i64: 8, 32>}, {transform_indices = @transform_2, window_bounds = array<i64: 8, 128>}]} {
    %c0 = arith.constant 0 : index
    %c0_0 = arith.constant 0 : index
    %0 = vector.load %arg1[%c0, %c0_0] : memref<8x32xf32, #tpu.memory_space<vmem>>, vector<8x32xf32>
    %cst = arith.constant 2.500000e-01 : f32
    %1 = vector.broadcast %cst : f32 to vector<8x32xf32>
    %2 = arith.mulf %0, %1 : vector<8x32xf32>
    %c0_1 = arith.constant 0 : index
    %c0_2 = arith.constant 0 : index
    %3 = vector.load %arg2[%c0_1, %c0_2] : memref<8x32xf32, #tpu.memory_space<vmem>>, vector<8x32xf32>
    %cst_3 = arith.constant 2.500000e-01 : f32
    %4 = vector.broadcast %cst_3 : f32 to vector<8x32xf32>
    %5 = arith.mulf %3, %4 : vector<8x32xf32>
    %cst_4 = arith.constant dense<0xFF800000> : vector<8xf32>
    %6 = vector.multi_reduction <maximumf>, %2, %cst_4 [1] : vector<8x32xf32> to vector<8xf32>
    %7 = vector.shape_cast %6 : vector<8xf32> to vector<8x1xf32>
    %8 = vector.broadcast %7 : vector<8x1xf32> to vector<8x32xf32>
    %9 = arith.subf %2, %8 : vector<8x32xf32>
    %10 = math.exp %9 : vector<8x32xf32>
    %cst_5 = arith.constant dense<0.000000e+00> : vector<8xf32>
    %11 = vector.multi_reduction <add>, %10, %cst_5 [1] : vector<8x32xf32> to vector<8xf32>
    %12 = vector.shape_cast %11 : vector<8xf32> to vector<8x1xf32>
    %cst_6 = arith.constant dense<0xFF800000> : vector<8xf32>
    %13 = vector.multi_reduction <maximumf>, %5, %cst_6 [1] : vector<8x32xf32> to vector<8xf32>
    %14 = vector.shape_cast %13 : vector<8xf32> to vector<8x1xf32>
    %15 = vector.broadcast %14 : vector<8x1xf32> to vector<8x32xf32>
    %16 = arith.subf %5, %15 : vector<8x32xf32>
    %17 = math.exp %16 : vector<8x32xf32>
    %cst_7 = arith.constant dense<0.000000e+00> : vector<8xf32>
    %18 = vector.multi_reduction <add>, %17, %cst_7 [1] : vector<8x32xf32> to vector<8xf32>
    %19 = vector.shape_cast %18 : vector<8xf32> to vector<8x1xf32>
    %20 = arith.subf %16, %9 : vector<8x32xf32>
    %21 = arith.mulf %17, %20 : vector<8x32xf32>
    %cst_8 = arith.constant dense<0.000000e+00> : vector<8xf32>
    %22 = vector.multi_reduction <add>, %21, %cst_8 [1] : vector<8x32xf32> to vector<8xf32>
    %23 = vector.shape_cast %22 : vector<8xf32> to vector<8x1xf32>
    %24 = tpu.reciprocal %19 : vector<8x1xf32> -> vector<8x1xf32>
    %25 = arith.mulf %24, %23 : vector<8x1xf32>
    %26 = math.log %12 : vector<8x1xf32>
    %27 = math.log %19 : vector<8x1xf32>
    %28 = arith.subf %26, %27 : vector<8x1xf32>
    %29 = arith.addf %25, %28 : vector<8x1xf32>
    %30 = vector.shape_cast %29 : vector<8x1xf32> to vector<1x8x1xf32>
    %cst_9 = arith.constant dense<0.000000e+00> : vector<1xf32>
    %31 = vector.multi_reduction <add>, %30, %cst_9 [1, 2] : vector<1x8x1xf32> to vector<1xf32>
    %32 = vector.shape_cast %31 : vector<1xf32> to vector<1x1x1xf32>
    %33 = vector.extract %32[0, 0, 0] : f32 from vector<1x1x1xf32>
    %34 = tpu.iota {dimensions = array<i32: 0>} : vector<8x128xi32>
    %35 = tpu.iota {dimensions = array<i32: 1>} : vector<8x128xi32>
    %c0_i32 = arith.constant 0 : i32
    %36 = vector.broadcast %c0_i32 : i32 to vector<8x128xi32>
    %37 = arith.cmpi eq, %34, %36 : vector<8x128xi32>
    %c0_i32_10 = arith.constant 0 : i32
    %38 = vector.broadcast %c0_i32_10 : i32 to vector<8x128xi32>
    %39 = arith.cmpi eq, %35, %38 : vector<8x128xi32>
    %40 = arith.andi %37, %39 : vector<8x128xi1>
    %cst_11 = arith.constant 0.000000e+00 : f32
    %41 = vector.broadcast %33 : f32 to vector<8x128xf32>
    %42 = vector.broadcast %cst_11 : f32 to vector<8x128xf32>
    %43 = arith.select %40, %41, %42 : vector<8x128xi1>, vector<8x128xf32>
    %c0_12 = arith.constant 0 : index
    %c0_13 = arith.constant 0 : index
    %44 = vector.load %arg3[%c0_12, %c0_13] : memref<8x128xf32, #tpu.memory_space<vmem>>, vector<8x128xf32>
    tpu.vector_store %arg3[%c0_12, %c0_13], %43 {strides = array<i32>} : memref<8x128xf32, #tpu.memory_space<vmem>>, vector<8x128xf32>,
    return
  }
  func.func @transform_0(%arg0: i32) -> (i32, i32) {
    %c0_i32 = arith.constant 0 : i32
    %c0_i32_0 = arith.constant 0 : i32
    return %arg0, %c0_i32 : i32, i32
  }
  func.func @transform_1(%arg0: i32) -> (i32, i32) {
    %c0_i32 = arith.constant 0 : i32
    %c0_i32_0 = arith.constant 0 : i32
    return %arg0, %c0_i32 : i32, i32
  }
  func.func @transform_2(%arg0: i32) -> (i32, i32) {
    %c0_i32 = arith.constant 0 : i32
    %c0_i32_0 = arith.constant 0 : i32
    return %arg0, %c0_i32 : i32, i32
  }
}

</mosaic_0001>

<llo_original>
// kernel: tpu_custom_call.1
$region0: #{tpu_custom_call.1}
  #allocation0 [shape = 'u32[]', space=smem, size = 0x4, offset = 0x4, fixed_abs, tag = 'smem constant byte address 0x4 - core index']
  #allocation1 [shape = 'u32[144,128]{1,0:T(1,128)}', space=vmem, size = 0x12000, scoped, tag = 'internal scratch']
  %s0 = inlined_call_operand.hbm [shape: f32[8,32], index: 0, kind: input, shape index: {}]
  %s1 = inlined_call_operand.hbm [shape: f32[8,32], index: 1, kind: input, shape index: {}]
  %s2 = inlined_call_operand.hbm [shape: f32[8,128], index: 2, kind: output, shape index: {}]
  %s3 = sld [smem:[#allocation0]]
  $region26: #{tpu_custom_call.1} parent=0
    _
  %s5 = ssub.s32 1, %s3
  %s6 = scalar_select 0, %s5, %s3
  $region1: #{tpu_custom_call.1} parent=0
    #allocation2 [shape = 'u8[4096]{0}', space=vmem, size = 0x1000, scoped, tag = 'input window, operand 0, single buffered']
    #allocation3 [shape = 's32[1]{0}', space=sflag, size = 0x4, scoped, tag = 'scoped memory for tpu_custom_call.1']
    #allocation4 [shape = 's32[1]{0}', space=sflag, size = 0x4, scoped, tag = 'scoped memory for tpu_custom_call.1']
    #allocation5 [shape = 'u8[4096]{0}', space=vmem, size = 0x1000, scoped, tag = 'input window, operand 1, single buffered']
    #allocation6 [shape = 's32[1]{0}', space=sflag, size = 0x4, scoped, tag = 'scoped memory for tpu_custom_call.1']
    #allocation7 [shape = 'u8[4096]{0}', space=vmem, size = 0x1000, scoped, tag = 'output window, operand 0, single buffered']
    %7 = vsyncpa [#allocation3], 0
    %8 = vsyncpa [#allocation6], 0
    %9 = vsyncpa [#allocation4], 0
    // Predicated region
    $region2: #{tpu_custom_call.1} parent=1 // pred_check
      _
    $region3: #{tpu_custom_call.1} parent=1 // pred_check_branch
      %11 = sbr.rel (0) target = $region5
    $region4: #{tpu_custom_call.1} parent=1 // pred_region
      %s13 = ssub.s32 128, 128
      %14 = vsyncadd [#allocation3], %s13
      %s16 = sshll.u32 [#allocation2], 4
      %s17 = int_to_ptr.vmem [resolvable:$true] %s16
      %19 = dma.hbm_to_vmem [thread:$0]  %s0, 128, %s17, [#allocation3]
    $region5: #{tpu_custom_call.1} parent=1 // pred_fallthru
      _
    // Predicated region
    $region6: #{tpu_custom_call.1} parent=1 // pred_check
      _
    $region7: #{tpu_custom_call.1} parent=1 // pred_check_branch
      %21 = sbr.rel (0) target = $region9
    $region8: #{tpu_custom_call.1} parent=1 // pred_region
      %s23 = ssub.s32 128, 128
      %24 = vsyncadd [#allocation6], %s23
      %s26 = sshll.u32 [#allocation5], 4
      %s27 = int_to_ptr.vmem [resolvable:$true] %s26
      %29 = dma.hbm_to_vmem [thread:$0]  %s1, 128, %s27, [#allocation6]
    $region9: #{tpu_custom_call.1} parent=1 // pred_fallthru
      _
    // Predicated region
    $region10: #{tpu_custom_call.1} parent=1 // pred_check
      _
    $region11: #{tpu_custom_call.1} parent=1 // pred_check_branch
      %31 = sbr.rel (0) target = $region13
    $region12: #{tpu_custom_call.1} parent=1 // pred_region
      %32 = dma.done [#allocation3], 128
    $region13: #{tpu_custom_call.1} parent=1 // pred_fallthru
      _
    // Predicated region
    $region14: #{tpu_custom_call.1} parent=1 // pred_check
      _
    $region15: #{tpu_custom_call.1} parent=1 // pred_check_branch
      %34 = sbr.rel (0) target = $region17
    $region16: #{tpu_custom_call.1} parent=1 // pred_region
      %35 = dma.done [#allocation6], 128
    $region17: #{tpu_custom_call.1} parent=1 // pred_fallthru
      _
    %v36 = vld [vmem:[#allocation2] sm:$0xff]
    %v37 = vmul.f32 %v36, 0.25
    %v38 = vld [vmem:[#allocation5] sm:$0xff]
    %v39 = vmul.f32 %v38, 0.25
    %vm40 = vcmask 261120
    %v41 = vsel %vm40, %v37, -inf
    %42 = vmax.xlane.f32.xlu0 %v41
    %v43 = vpop.xlane.xlu0 %42
    %v44 = vsub.f32 %v37, %v43
    %v45 = vmul.f32 %v44, 1.442695
    %v46 = vpow.pop %v45
    %v47 = vsel %vm40, %v46, 0.0
    %48 = vadd.xlane.f32.xlu0 %v47
    %v49 = vpop.xlane.xlu0 %48
    %v50 = vsel %vm40, %v39, -inf
    %51 = vmax.xlane.f32.xlu0 %v50
    %v52 = vpop.xlane.xlu0 %51
    %v53 = vsub.f32 %v39, %v52
    %v54 = vmul.f32 %v53, 1.442695
    %v55 = vpow.pop %v54
    %v56 = vsel %vm40, %v55, 0.0
    %57 = vadd.xlane.f32.xlu0 %v56
    %v58 = vpop.xlane.xlu0 %57
    %v59 = vsub.f32 %v53, %v44
    %v60 = vmul.f32 %v55, %v59
    %v61 = vsel %vm40, %v60, 0.0
    %62 = vadd.xlane.f32.xlu0 %v61
    %v63 = vpop.xlane.xlu0 %62
    %v64 = vrcp.pop %v58
    %v65 = vmul.f32 %v64, %v63
    %v66 = vlog2.pop %v49
    %v67 = vmul.f32 %v66, 0.6931472
    %v68 = vlog2.pop %v58
    %v69 = vmul.f32 %v68, 0.6931472
    %v70 = vsub.f32 %v67, %v69
    %v71 = vadd.f32 %v65, %v70
    %vm72 = vcmask 7168
    %v73 = vsel %vm72, %v71, 0.0
    %74 = vadd.xlane.f32.xlu0 %v73
    %v75 = vpop.xlane.xlu0 %74
    %v76 = vrot.slane %v75, 4
    %v77 = vadd.f32 %v75, %v76
    %v78 = vrot.slane %v77, 2
    %v79 = vadd.f32 %v77, %v78
    %v80 = vrot.slane %v79, 1
    %v81 = vadd.f32 %v79, %v80
    %s82 = vtos %v81
    %v83 = vlaneseq
    %v84 = vshrl.u32 %v83, 7
    %v85 = vlaneseq
    %v86 = vand.u32 %v85, 127
    %vm87 = vcmp.eq.s32.totalorder %v84, 0
    %vm88 = vcmp.eq.s32.totalorder %v86, 0
    %vm89 = vmand %vm87, %vm88
    %v90 = vstv %s82
    %v91 = vsel %vm89, %v90, 0.0
    %92 = vst [vmem:[#allocation7] sm:$0xff] %v91
    // Predicated region
    $region18: #{tpu_custom_call.1} parent=1 // pred_check
      _
    $region19: #{tpu_custom_call.1} parent=1 // pred_check_branch
      %94 = sbr.rel (0) target = $region21
    $region20: #{tpu_custom_call.1} parent=1 // pred_region
      %s96 = ssub.s32 128, 128
      %97 = vsyncadd [#allocation4], %s96
      %s99 = sshll.u32 [#allocation7], 4
      %s100 = int_to_ptr.vmem [resolvable:$true] %s99
      %102 = dma.vmem_to_hbm [thread:$0]  %s100, 128, %s2, [#allocation4]
    $region21: #{tpu_custom_call.1} parent=1 // pred_fallthru
      _
    // Predicated region
    $region22: #{tpu_custom_call.1} parent=1 // pred_check
      _
    $region23: #{tpu_custom_call.1} parent=1 // pred_check_branch
      %104 = sbr.rel (0) target = $region25
    $region24: #{tpu_custom_call.1} parent=1 // pred_region
      %105 = dma.done [#allocation4], 128
    $region25: #{tpu_custom_call.1} parent=1 // pred_fallthru
      _
    %106 = vsyncpa [#allocation3], 1
    %107 = vsyncpa [#allocation6], 1
    %108 = vsyncpa [#allocation4], 1

</llo_original>
